<compile_context>
chip_gen: v5e
topology: v5e:2x2
jax: 0.10.0
libtpu: 0.0.40
codegen_flags: <defaults>
</compile_context>

<pallas_src>
import functools

import numpy as np
import jax
import jax.numpy as jnp
from jax.experimental import pallas as pl
from jax.experimental.pallas import tpu as pltpu


def _round_up(x, m):
    return (x + m - 1) // m * m


# ----------------------------------------------------------------------------
# Fused forward kernel (everything VMEM / vreg resident)
# ----------------------------------------------------------------------------
def fused_forward_kernel(B, Lout_pad,
                         win_ref, mask_ref, vd_ref,
                         wc_ref, bc_ref, wfc_ref, bfc_ref, wo_ref, bo_ref,
                         o_ref):
    """win_ref : (B*Lout_pad, K_max*C) lane-dense im2col windows
       mask_ref: (Lout_pad, n_k*O)     0 where valid, -1e30 where padded/invalid
       vd_ref  : (B, VEC+DESC)         [network vector | protein description]
       wc_ref  : (K_max*C, n_k*O)      all conv branches stacked column-wise
       bc_ref  : (1, n_k*O)            stacked conv biases
       wfc_ref : (n_k*O+VEC+DESC, 3H)  block-diagonal fused fc weights
       bfc_ref : (1, 3H)
       wo_ref  : (3H, N_pad)           cat2emb folded into emb^T
       bo_ref  : (1, N_pad)
       o_ref   : (B, N_pad)            sigmoid scores (lane-dense)
    """
    # --- all conv branches: ONE MXU matmul over pre-built windows ------------
    conv = jnp.dot(win_ref[...], wc_ref[...],
                   preferred_element_type=jnp.float32)            # (B*Lout_pad, n_k*O)
    nko = conv.shape[-1]
    conv = conv.reshape(B, Lout_pad, nko) + mask_ref[...]         # mask bcast over B

    # --- global max pool (single aligned reduction); bias hoisted past max ---
    pooled = jnp.max(conv, axis=1) + bc_ref[...]                  # (B, n_k*O)

    # --- fc_x / fc_vector / fc_description fused: one block-diag matmul ------
    fc_in = jnp.concatenate([pooled, vd_ref[...]], axis=-1)       # (B, n_k*O+VEC+DESC)
    hid = jnp.maximum(
        jnp.dot(fc_in, wfc_ref[...], preferred_element_type=jnp.float32)
        + bfc_ref[...], 0.0)                                      # (B, 3*HID)

    # --- cat2emb folded into the label matmul, sigmoid via tanh (EUP) --------
    x2 = jnp.dot(hid, wo_ref[...], preferred_element_type=jnp.float32) + bo_ref[...]
    o_ref[...] = 0.5 * (jnp.tanh(0.5 * x2) + 1.0)


# ----------------------------------------------------------------------------
# Parameter construction (conv weights stored tap-major as (K, C, O))
# ----------------------------------------------------------------------------
def init_params(key, *, input_nc=4, in_nc=16, max_kernels=17, seq_len=64,
                hidden_dim=32, vector_dim=24, description_dim=16, emb_dim=16):
    kernels = list(range(8, max_kernels, 8))
    kernel_num = len(kernels)
    keys = jax.random.split(key, 4 * kernel_num + 16)
    ki = iter(range(len(keys)))

    def nrm(shape, scale=0.1):
        return scale * jax.random.normal(keys[next(ki)], shape, dtype=jnp.float32)

    params = {"kernels": kernels, "seq_len": seq_len}
    # NOTE: real PyTorch Conv1d weights are (O, C, K); to import them use
    # w.permute(2, 1, 0) so they land in this (K, C, O) tap-major layout.
    params["convs"] = [(nrm((k, input_nc, in_nc)), nrm((1, in_nc))) for k in kernels]
    seq_feat_dim = kernel_num * in_nc
    params["fc_x_w"] = nrm((seq_feat_dim, hidden_dim))
    params["fc_x_b"] = nrm((1, hidden_dim))
    params["fc_desc_w"] = nrm((description_dim, hidden_dim))
    params["fc_desc_b"] = nrm((1, hidden_dim))
    params["fc_vec_w"] = nrm((vector_dim, hidden_dim))
    params["fc_vec_b"] = nrm((1, hidden_dim))
    params["cat_w"] = nrm((3 * hidden_dim, emb_dim))
    params["cat_b"] = nrm((1, emb_dim))
    return params


# ----------------------------------------------------------------------------
# Forward: wrapper does layout prep / weight folding, one fused pallas_call
# ----------------------------------------------------------------------------
def forward(params, x_ncw, x_description, x_vector, emb_tensor):
    """x_ncw: (B, C, L) like PyTorch NCW; emb_tensor: (N_labels, emb_dim)."""
    kernels = params["kernels"]
    n_k = len(kernels)
    B, C, L = x_ncw.shape
    assert all(k <= L for k in kernels), "kernel size exceeds sequence length"
    K_max = max(kernels)
    O = params["convs"][0][0].shape[-1]
    nko = n_k * O
    Lout_pad = _round_up(L - min(kernels) + 1, 8)

    # NCW -> NLC; pad L so every window position up to Lout_pad-1 exists.
    x_nlc = jnp.transpose(x_ncw, (0, 2, 1))
    pad_len = Lout_pad + K_max - 1 - L
    x_pad = jnp.pad(x_nlc, ((0, 0), (0, pad_len), (0, 0)))

    # Lane-dense im2col built in the wrapper (tap-major, channel-minor):
    # row (b, l) = [x[b,l+0,:], ..., x[b,l+K_max-1,:]]  ->  (B*Lout_pad, K_max*C)
    taps = jnp.stack([x_pad[:, t:t + Lout_pad, :] for t in range(K_max)], axis=2)
    windows = taps.reshape(B * Lout_pad, K_max * C)

    # Stack every conv branch into one (K_max*C, n_k*O) weight (zero-padded
    # taps) and one (1, n_k*O) bias.
    w_blocks, b_blocks = [], []
    for (w, b) in params["convs"]:
        K_i = w.shape[0]
        w2d = w.reshape(K_i * C, O)
        w_blocks.append(jnp.pad(w2d, ((0, (K_max - K_i) * C), (0, 0))))
        b_blocks.append(b)
    w_conv = jnp.concatenate(w_blocks, axis=1)          # (K_max*C, n_k*O)
    b_conv = jnp.concatenate(b_blocks, axis=1)          # (1, n_k*O)

    # Additive max-pool mask: 0 where position < Lout_i for that branch's
    # output columns, -1e30 otherwise (covers both shorter-branch tails and
    # the Lout padding).
    col_lout = np.repeat(np.array([L - k + 1 for k in kernels]), O)
    mask_np = np.where(np.arange(Lout_pad)[:, None] < col_lout[None, :], 0.0, -1e30)
    pool_mask = jnp.asarray(mask_np, dtype=jnp.float32)

    # Feature order ['seqs', 'network', 'protein description']:
    # fused FC operand = [seqs | vector | description], block-diagonal weight.
    vecdesc = jnp.concatenate([x_vector, x_description], axis=-1)
    VEC = x_vector.shape[-1]
    DESC = x_description.shape[-1]
    HID = params["fc_x_w"].shape[-1]
    d_in = nko + VEC + DESC
    w_fc = jnp.zeros((d_in, 3 * HID), jnp.float32)
    w_fc = w_fc.at[:nko, :HID].set(params["fc_x_w"])
    w_fc = w_fc.at[nko:nko + VEC, HID:2 * HID].set(params["fc_vec_w"])
    w_fc = w_fc.at[nko + VEC:, 2 * HID:].set(params["fc_desc_w"])
    b_fc = jnp.concatenate(
        [params["fc_x_b"], params["fc_vec_b"], params["fc_desc_b"]], axis=-1)

    # Fold cat2emb into the label matmul; pad labels to a lane-dense multiple
    # of 128 (zero columns -> sliced off below).
    n_labels = emb_tensor.shape[0]
    n_pad = _round_up(max(n_labels, 1), 128)
    emb_t = jnp.pad(jnp.transpose(emb_tensor, (1, 0)),
                    ((0, 0), (0, n_pad - n_labels)))
    w_out = params["cat_w"] @ emb_t                     # (3*HID, n_pad)
    b_out = params["cat_b"] @ emb_t                     # (1, n_pad)

    inputs = [windows, pool_mask, vecdesc,
              w_conv, b_conv, w_fc, b_fc, w_out, b_out]
    vmem = pl.BlockSpec(memory_space=pltpu.MemorySpace.VMEM)

    out = pl.pallas_call(
        functools.partial(fused_forward_kernel, B, Lout_pad),
        out_shape=jax.ShapeDtypeStruct((B, n_pad), jnp.float32),
        in_specs=[vmem] * len(inputs),
        out_specs=vmem,
    )(*inputs)
    return out[:, :n_labels]


# ----------------------------------------------------------------------------
# Pure-JAX reference (mirrors the PyTorch forward) for a correctness check
# ----------------------------------------------------------------------------
def reference_forward(params, x_ncw, x_description, x_vector, emb_tensor):
    B, C, L = x_ncw.shape
    x_nlc = jnp.transpose(x_ncw, (0, 2, 1))
    feats = []
    for (w, b) in params["convs"]:
        K = w.shape[0]
        Lout = L - K + 1
        conv = sum(x_nlc[:, t:t + Lout, :] @ w[t] for t in range(K)) + b
        feats.append(jnp.max(conv, axis=1))
    seqs = jnp.concatenate(feats, axis=-1)
    f_seqs = jax.nn.relu(seqs @ params["fc_x_w"] + params["fc_x_b"])
    f_desc = jax.nn.relu(x_description @ params["fc_desc_w"] + params["fc_desc_b"])
    f_vec = jax.nn.relu(x_vector @ params["fc_vec_w"] + params["fc_vec_b"])
    x_cat = jnp.concatenate([f_seqs, f_vec, f_desc], axis=-1)
    x1 = x_cat @ params["cat_w"] + params["cat_b"]
    return jax.nn.sigmoid(x1 @ emb_tensor.T)


# ----------------------------------------------------------------------------
# Main
# ----------------------------------------------------------------------------
if __name__ == "__main__":
    B = 2
    C = 4            # input_nc
    O = 16           # in_nc
    L = 64           # seqL
    HID = 32         # hidden_dim[-1]
    VEC = 24         # vector_dim
    DESC = 16        # description_dim
    EMB = 16         # emb_dim
    NLAB = 8         # number of label embeddings

    root = jax.random.PRNGKey(0)
    k_par, k_x, k_d, k_v, k_e = jax.random.split(root, 5)

    params = init_params(
        k_par, input_nc=C, in_nc=O, max_kernels=17,   # kernels = [8, 16]
        seq_len=L, hidden_dim=HID, vector_dim=VEC,
        description_dim=DESC, emb_dim=EMB)

    x = jax.random.normal(k_x, (B, C, L), dtype=jnp.float32)   # NCW like PyTorch
    x_description = jax.random.normal(k_d, (B, DESC), dtype=jnp.float32)
    x_vector = jax.random.normal(k_v, (B, VEC), dtype=jnp.float32)
    emb_tensor = jax.random.normal(k_e, (NLAB, EMB), dtype=jnp.float32)

    fwd = jax.jit(functools.partial(forward, params))
    out = jax.block_until_ready(fwd(x, x_description, x_vector, emb_tensor))

    ref = reference_forward(params, x, x_description, x_vector, emb_tensor)

    assert out.shape == (B, NLAB)
    assert bool(jnp.all(jnp.isfinite(out)))
    assert bool(jnp.all((out >= 0.0) & (out <= 1.0)))          # sigmoid range
    assert bool(jnp.allclose(out, ref, rtol=1e-4, atol=1e-4))  # matches module math

    print("KERNEL_OK")
</pallas_src>

<mosaic_0001>
module attributes {stable_mosaic.version = 11 : i64} {
  func.func @fused_forward_kernel(%arg0: memref<128x64xf32, #tpu.memory_space<vmem>>, %arg1: memref<64x32xf32, #tpu.memory_space<vmem>>, %arg2: memref<2x40xf32, #tpu.memory_space<vmem>>, %arg3: memref<64x32xf32, #tpu.memory_space<vmem>>, %arg4: memref<1x32xf32, #tpu.memory_space<vmem>>, %arg5: memref<72x96xf32, #tpu.memory_space<vmem>>, %arg6: memref<1x96xf32, #tpu.memory_space<vmem>>, %arg7: memref<96x128xf32, #tpu.memory_space<vmem>>, %arg8: memref<1x128xf32, #tpu.memory_space<vmem>>, %arg9: memref<2x128xf32, #tpu.memory_space<vmem>>) attributes {dimension_semantics = [], scalar_prefetch = 0 : i64, scratch_operands = 0 : i64, tpu.core_type = #tpu.core_type<tc>} {
    %c0 = arith.constant 0 : index
    %c0_0 = arith.constant 0 : index
    %0 = vector.load %arg0[%c0, %c0_0] : memref<128x64xf32, #tpu.memory_space<vmem>>, vector<128x64xf32>
    %c0_1 = arith.constant 0 : index
    %c0_2 = arith.constant 0 : index
    %1 = vector.load %arg3[%c0_1, %c0_2] : memref<64x32xf32, #tpu.memory_space<vmem>>, vector<64x32xf32>
    %cst = arith.constant dense<0.000000e+00> : vector<128x32xf32>
    %2 = tpu.matmul %0, %1, %cst {dimension_numbers = #tpu.dot_dimension_numbers<[1], [0], [0], [1], [0, 0, 1, 1], [], []>} : vector<128x64xf32>, vector<64x32xf32>, vector<128x32xf32> -> vector<128x32xf32>
    %3 = vector.shape_cast %2 : vector<128x32xf32> to vector<2x64x32xf32>
    %c0_3 = arith.constant 0 : index
    %c0_4 = arith.constant 0 : index
    %4 = vector.load %arg1[%c0_3, %c0_4] : memref<64x32xf32, #tpu.memory_space<vmem>>, vector<64x32xf32>
    %5 = vector.shape_cast %4 : vector<64x32xf32> to vector<1x64x32xf32>
    %6 = vector.broadcast %5 : vector<1x64x32xf32> to vector<2x64x32xf32>
    %7 = arith.addf %3, %6 : vector<2x64x32xf32>
    %cst_5 = arith.constant dense<0xFF800000> : vector<2x32xf32>
    %8 = vector.multi_reduction <maximumf>, %7, %cst_5 [1] : vector<2x64x32xf32> to vector<2x32xf32>
    %c0_6 = arith.constant 0 : index
    %c0_7 = arith.constant 0 : index
    %9 = vector.load %arg4[%c0_6, %c0_7] : memref<1x32xf32, #tpu.memory_space<vmem>>, vector<1x32xf32>
    %10 = vector.broadcast %9 : vector<1x32xf32> to vector<2x32xf32>
    %11 = arith.addf %8, %10 : vector<2x32xf32>
    %c0_8 = arith.constant 0 : index
    %c0_9 = arith.constant 0 : index
    %12 = vector.load %arg2[%c0_8, %c0_9] : memref<2x40xf32, #tpu.memory_space<vmem>>, vector<2x40xf32>
    %13 = tpu.concatenate %11, %12 in 1 : vector<2x32xf32>, vector<2x40xf32> -> vector<2x72xf32>
    %c0_10 = arith.constant 0 : index
    %c0_11 = arith.constant 0 : index
    %14 = vector.load %arg5[%c0_10, %c0_11] : memref<72x96xf32, #tpu.memory_space<vmem>>, vector<72x96xf32>
    %cst_12 = arith.constant dense<0.000000e+00> : vector<2x96xf32>
    %15 = tpu.matmul %13, %14, %cst_12 {dimension_numbers = #tpu.dot_dimension_numbers<[1], [0], [0], [1], [0, 0, 1, 1], [], []>} : vector<2x72xf32>, vector<72x96xf32>, vector<2x96xf32> -> vector<2x96xf32>
    %c0_13 = arith.constant 0 : index
    %c0_14 = arith.constant 0 : index
    %16 = vector.load %arg6[%c0_13, %c0_14] : memref<1x96xf32, #tpu.memory_space<vmem>>, vector<1x96xf32>
    %17 = vector.broadcast %16 : vector<1x96xf32> to vector<2x96xf32>
    %18 = arith.addf %15, %17 : vector<2x96xf32>
    %cst_15 = arith.constant 0.000000e+00 : f32
    %19 = vector.broadcast %cst_15 : f32 to vector<2x96xf32>
    %20 = arith.maximumf %18, %19 : vector<2x96xf32>
    %c0_16 = arith.constant 0 : index
    %c0_17 = arith.constant 0 : index
    %21 = vector.load %arg7[%c0_16, %c0_17] : memref<96x128xf32, #tpu.memory_space<vmem>>, vector<96x128xf32>
    %cst_18 = arith.constant dense<0.000000e+00> : vector<2x128xf32>
    %22 = tpu.matmul %20, %21, %cst_18 {dimension_numbers = #tpu.dot_dimension_numbers<[1], [0], [0], [1], [0, 0, 1, 1], [], []>} : vector<2x96xf32>, vector<96x128xf32>, vector<2x128xf32> -> vector<2x128xf32>
    %c0_19 = arith.constant 0 : index
    %c0_20 = arith.constant 0 : index
    %23 = vector.load %arg8[%c0_19, %c0_20] : memref<1x128xf32, #tpu.memory_space<vmem>>, vector<1x128xf32>
    %24 = vector.broadcast %23 : vector<1x128xf32> to vector<2x128xf32>
    %25 = arith.addf %22, %24 : vector<2x128xf32>
    %cst_21 = arith.constant 5.000000e-01 : f32
    %26 = vector.broadcast %cst_21 : f32 to vector<2x128xf32>
    %27 = arith.mulf %26, %25 : vector<2x128xf32>
    %28 = math.tanh %27 : vector<2x128xf32>
    %cst_22 = arith.constant 1.000000e+00 : f32
    %29 = vector.broadcast %cst_22 : f32 to vector<2x128xf32>
    %30 = arith.addf %28, %29 : vector<2x128xf32>
    %cst_23 = arith.constant 5.000000e-01 : f32
    %31 = vector.broadcast %cst_23 : f32 to vector<2x128xf32>
    %32 = arith.mulf %31, %30 : vector<2x128xf32>
    %c0_24 = arith.constant 0 : index
    %c0_25 = arith.constant 0 : index
    %33 = vector.load %arg9[%c0_24, %c0_25] : memref<2x128xf32, #tpu.memory_space<vmem>>, vector<2x128xf32>
    tpu.vector_store %arg9[%c0_24, %c0_25], %32 {strides = array<i32>} : memref<2x128xf32, #tpu.memory_space<vmem>>, vector<2x128xf32>,
    return
  }
}

</mosaic_0001>

<llo_original>
// kernel: forward.1
$region0: #{forward.1}
  #allocation0 [shape = 'u32[]', space=smem, size = 0x4, offset = 0x4, fixed_abs, tag = 'smem constant byte address 0x4 - core index']
  #allocation1 [shape = 'u32[72,128]{1,0:T(1,128)}', space=vmem, size = 0x9000, scoped, tag = 'internal scratch']
  %s0 = inlined_call_operand.vmem [shape: f32[128,64], index: 0, kind: input, shape index: {}]
  %s1 = inlined_call_operand.vmem [shape: f32[64,32], index: 1, kind: input, shape index: {}]
  %s2 = inlined_call_operand.vmem [shape: f32[2,40], index: 2, kind: input, shape index: {}]
  %s3 = inlined_call_operand.vmem [shape: f32[64,32], index: 3, kind: input, shape index: {}]
  %s4 = inlined_call_operand.vmem [shape: f32[1,32], index: 4, kind: input, shape index: {}]
  %s5 = inlined_call_operand.vmem [shape: f32[72,96], index: 5, kind: input, shape index: {}]
  %s6 = inlined_call_operand.vmem [shape: f32[1,96], index: 6, kind: input, shape index: {}]
  %s7 = inlined_call_operand.vmem [shape: f32[96,128], index: 7, kind: input, shape index: {}]
  %s8 = inlined_call_operand.vmem [shape: f32[1,128], index: 8, kind: input, shape index: {}]
  %s9 = inlined_call_operand.hbm [shape: f32[2,128], index: 9, kind: output, shape index: {}]
  %s10 = sld [smem:[#allocation0]]
  $region46: #{forward.1} parent=0
    _
  %s12 = ssub.s32 1, %s10
  %s13 = scalar_select 0, %s12, %s10
  $region1: #{forward.1} parent=0
    #allocation2 [shape = 'u8[1024]{0}', space=vmem, size = 0x400, scoped, tag = 'output window, operand 0, single buffered']
    #allocation3 [shape = 's32[1]{0}', space=sflag, size = 0x4, scoped, tag = 'scoped memory for forward.1']
    %14 = vsyncpa [#allocation3], 0
    // Predicated region
    $region2: #{forward.1} parent=1 // pred_check
      _
    $region3: #{forward.1} parent=1 // pred_check_branch
      %16 = sbr.rel (0) target = $region5
    $region4: #{forward.1} parent=1 // pred_region
      _
    $region5: #{forward.1} parent=1 // pred_fallthru
      _
    // Predicated region
    $region6: #{forward.1} parent=1 // pred_check
      _
    $region7: #{forward.1} parent=1 // pred_check_branch
      %18 = sbr.rel (0) target = $region9
    $region8: #{forward.1} parent=1 // pred_region
      _
    $region9: #{forward.1} parent=1 // pred_fallthru
      _
    // Predicated region
    $region10: #{forward.1} parent=1 // pred_check
      _
    $region11: #{forward.1} parent=1 // pred_check_branch
      %20 = sbr.rel (0) target = $region13
    $region12: #{forward.1} parent=1 // pred_region
      _
    $region13: #{forward.1} parent=1 // pred_fallthru
      _
    // Predicated region
    $region14: #{forward.1} parent=1 // pred_check
      _
    $region15: #{forward.1} parent=1 // pred_check_branch
      %22 = sbr.rel (0) target = $region17
    $region16: #{forward.1} parent=1 // pred_region
      _
    $region17: #{forward.1} parent=1 // pred_fallthru
      _
    // Predicated region
    $region18: #{forward.1} parent=1 // pred_check
      _
    $region19: #{forward.1} parent=1 // pred_check_branch
      %24 = sbr.rel (0) target = $region21
    $region20: #{forward.1} parent=1 // pred_region
      _
    $region21: #{forward.1} parent=1 // pred_fallthru
      _
    // Predicated region
    $region22: #{forward.1} parent=1 // pred_check
      _
    $region23: #{forward.1} parent=1 // pred_check_branch
      %26 = sbr.rel (0) target = $region25
    $region24: #{forward.1} parent=1 // pred_region
      _
    $region25: #{forward.1} parent=1 // pred_fallthru
      _
    // Predicated region
    $region26: #{forward.1} parent=1 // pred_check
      _
    $region27: #{forward.1} parent=1 // pred_check_branch
      %28 = sbr.rel (0) target = $region29
    $region28: #{forward.1} parent=1 // pred_region
      _
    $region29: #{forward.1} parent=1 // pred_fallthru
      _
    // Predicated region
    $region30: #{forward.1} parent=1 // pred_check
      _
    $region31: #{forward.1} parent=1 // pred_check_branch
      %30 = sbr.rel (0) target = $region33
    $region32: #{forward.1} parent=1 // pred_region
      _
    $region33: #{forward.1} parent=1 // pred_fallthru
      _
    // Predicated region
    $region34: #{forward.1} parent=1 // pred_check
      _
    $region35: #{forward.1} parent=1 // pred_check_branch
      %32 = sbr.rel (0) target = $region37
    $region36: #{forward.1} parent=1 // pred_region
      _
    $region37: #{forward.1} parent=1 // pred_fallthru
      _
    %v33 = vld [vmem:[%s0] sm:$0xff]
    %v34 = vld [vmem:[%s0 + $0x8] sm:$0xff]
    %v35 = vld [vmem:[%s0 + $0x10] sm:$0xff]
    %v36 = vld [vmem:[%s0 + $0x18] sm:$0xff]
    %v37 = vld [vmem:[%s0 + $0x20] sm:$0xff]
    %v38 = vld [vmem:[%s0 + $0x28] sm:$0xff]
    %v39 = vld [vmem:[%s0 + $0x30] sm:$0xff]
    %v40 = vld [vmem:[%s0 + $0x38] sm:$0xff]
    %v41 = vld [vmem:[%s0 + $0x40] sm:$0xff]
    %v42 = vld [vmem:[%s0 + $0x48] sm:$0xff]
    %v43 = vld [vmem:[%s0 + $0x50] sm:$0xff]
    %v44 = vld [vmem:[%s0 + $0x58] sm:$0xff]
    %v45 = vld [vmem:[%s0 + $0x60] sm:$0xff]
    %v46 = vld [vmem:[%s0 + $0x68] sm:$0xff]
    %v47 = vld [vmem:[%s0 + $0x70] sm:$0xff]
    %v48 = vld [vmem:[%s0 + $0x78] sm:$0xff]
    %v49 = vld [vmem:[%s3] sm:$0xff]
    %v50 = vld [vmem:[%s3 + $0x8] sm:$0xff]
    %v51 = vld [vmem:[%s3 + $0x10] sm:$0xff]
    %v52 = vld [vmem:[%s3 + $0x18] sm:$0xff]
    %v53 = vld [vmem:[%s3 + $0x20] sm:$0xff]
    %v54 = vld [vmem:[%s3 + $0x28] sm:$0xff]
    %v55 = vld [vmem:[%s3 + $0x30] sm:$0xff]
    %v56 = vld [vmem:[%s3 + $0x38] sm:$0xff]
    %vm57 = vcmask 523264
    %v59 = vsel %vm57, %v33, 0
    %v62 = vsel %vm57, %v34, 0
    %v65 = vsel %vm57, %v35, 0
    %v68 = vsel %vm57, %v36, 0
    %v71 = vsel %vm57, %v37, 0
    %v74 = vsel %vm57, %v38, 0
    %v77 = vsel %vm57, %v39, 0
    %v80 = vsel %vm57, %v40, 0
    %v83 = vsel %vm57, %v41, 0
    %v86 = vsel %vm57, %v42, 0
    %v89 = vsel %vm57, %v43, 0
    %v92 = vsel %vm57, %v44, 0
    %v95 = vsel %vm57, %v45, 0
    %v98 = vsel %vm57, %v46, 0
    %v101 = vsel %vm57, %v47, 0
    %v104 = vsel %vm57, %v48, 0
    %106 = vmatpush.msra.mxu0 0.0
    %107 = vmatpush.msra.mxu0 0.0
    %108 = vmatpush.msra.mxu0 0.0
    %109 = vmatpush.msra.mxu0 0.0
    %110 = vmatpush.msra.mxu0 0.0
    %111 = vmatpush.msra.mxu0 0.0
    %112 = vmatpush.msra.mxu0 0.0
    %113 = vmatpush.msra.mxu0 0.0
    %114 = vmatpush.msra.mxu0 %v56
    %115 = vmatpush.msra.mxu0 %v55
    %116 = vmatpush.msra.mxu0 %v54
    %117 = vmatpush.msra.mxu0 %v53
    %118 = vmatpush.msra.mxu0 %v52
    %119 = vmatpush.msra.mxu0 %v51
    %120 = vmatpush.msra.mxu0 %v50
    %121 = vmatpush.msra.mxu0 %v49
    %122 = vmatmul.f32.gmra.mxu0 %v59
    %v123 = vpop.f32.mrf.mxu0
    %v124 = vadd.f32 0.0, %v123
    %125 = vmatmul.f32.gmra.mxu0 %v62
    %v126 = vpop.f32.mrf.mxu0
    %v127 = vadd.f32 0.0, %v126
    %128 = vmatmul.f32.gmra.mxu0 %v65
    %v129 = vpop.f32.mrf.mxu0
    %v130 = vadd.f32 0.0, %v129
    %131 = vmatmul.f32.gmra.mxu0 %v68
    %v132 = vpop.f32.mrf.mxu0
    %v133 = vadd.f32 0.0, %v132
    %134 = vmatmul.f32.gmra.mxu0 %v71
    %v135 = vpop.f32.mrf.mxu0
    %v136 = vadd.f32 0.0, %v135
    %137 = vmatmul.f32.gmra.mxu0 %v74
    %v138 = vpop.f32.mrf.mxu0
    %v139 = vadd.f32 0.0, %v138
    %140 = vmatmul.f32.gmra.mxu0 %v77
    %v141 = vpop.f32.mrf.mxu0
    %v142 = vadd.f32 0.0, %v141
    %143 = vmatmul.f32.gmra.mxu0 %v80
    %v144 = vpop.f32.mrf.mxu0
    %v145 = vadd.f32 0.0, %v144
    %146 = vmatmul.f32.gmra.mxu0 %v83
    %v147 = vpop.f32.mrf.mxu0
    %v148 = vadd.f32 0.0, %v147
    %149 = vmatmul.f32.gmra.mxu0 %v86
    %v150 = vpop.f32.mrf.mxu0
    %v151 = vadd.f32 0.0, %v150
    %152 = vmatmul.f32.gmra.mxu0 %v89
    %v153 = vpop.f32.mrf.mxu0
    %v154 = vadd.f32 0.0, %v153
    %155 = vmatmul.f32.gmra.mxu0 %v92
    %v156 = vpop.f32.mrf.mxu0
    %v157 = vadd.f32 0.0, %v156
    %158 = vmatmul.f32.gmra.mxu0 %v95
    %v159 = vpop.f32.mrf.mxu0
    %v160 = vadd.f32 0.0, %v159
    %161 = vmatmul.f32.gmra.mxu0 %v98
    %v162 = vpop.f32.mrf.mxu0
    %v163 = vadd.f32 0.0, %v162
    %164 = vmatmul.f32.gmra.mxu0 %v101
    %v165 = vpop.f32.mrf.mxu0
    %v166 = vadd.f32 0.0, %v165
    %167 = vmatmul.f32.gmra.mxu0 %v104
    %v168 = vpop.f32.mrf.mxu0
    %v169 = vadd.f32 0.0, %v168
    %170 = vdwg.mxu0
    %v171 = vld [vmem:[%s1] sm:$0xff]
    %v172 = vld [vmem:[%s1 + $0x8] sm:$0xff]
    %v173 = vld [vmem:[%s1 + $0x10] sm:$0xff]
    %v174 = vld [vmem:[%s1 + $0x18] sm:$0xff]
    %v175 = vld [vmem:[%s1 + $0x20] sm:$0xff]
    %v176 = vld [vmem:[%s1 + $0x28] sm:$0xff]
    %v177 = vld [vmem:[%s1 + $0x30] sm:$0xff]
    %v178 = vld [vmem:[%s1 + $0x38] sm:$0xff]
    %v179 = vadd.f32 %v124, %v171
    %v180 = vadd.f32 %v127, %v172
    %v181 = vadd.f32 %v130, %v173
    %v182 = vadd.f32 %v133, %v174
    %v183 = vadd.f32 %v136, %v175
    %v184 = vadd.f32 %v139, %v176
    %v185 = vadd.f32 %v142, %v177
    %v186 = vadd.f32 %v145, %v178
    %v187 = vadd.f32 %v148, %v171
    %v188 = vadd.f32 %v151, %v172
    %v189 = vadd.f32 %v154, %v173
    %v190 = vadd.f32 %v157, %v174
    %v191 = vadd.f32 %v160, %v175
    %v192 = vadd.f32 %v163, %v176
    %v193 = vadd.f32 %v166, %v177
    %v194 = vadd.f32 %v169, %v178
    %vm195 = vcmask 261120
    %v196 = vsel %vm195, %v179, -inf
    %v197 = vsel %vm195, %v180, -inf
    %v198 = vsel %vm195, %v181, -inf
    %v199 = vmax.f32 %v196, %v198
    %v200 = vsel %vm195, %v182, -inf
    %v201 = vmax.f32 %v197, %v200
    %v202 = vsel %vm195, %v183, -inf
    %v203 = vmax.f32 %v199, %v202
    %v204 = vsel %vm195, %v184, -inf
    %v205 = vmax.f32 %v201, %v204
    %v206 = vsel %vm195, %v185, -inf
    %v207 = vmax.f32 %v203, %v206
    %v208 = vsel %vm195, %v186, -inf
    %v209 = vmax.f32 %v205, %v208
    %v210 = vmax.f32 %v207, %v209
    %v211 = vrot.slane %v210, 4
    %v212 = vmax.f32 %v210, %v211
    %v213 = vrot.slane %v212, 2
    %v214 = vmax.f32 %v212, %v213
    %v215 = vrot.slane %v214, 1
    %v216 = vmax.f32 %v214, %v215
    %v217 = vsel %vm195, %v187, -inf
    %v218 = vsel %vm195, %v188, -inf
    %v219 = vsel %vm195, %v189, -inf
    %v220 = vmax.f32 %v217, %v219
    %v221 = vsel %vm195, %v190, -inf
    %v222 = vmax.f32 %v218, %v221
    %v223 = vsel %vm195, %v191, -inf
    %v224 = vmax.f32 %v220, %v223
    %v225 = vsel %vm195, %v192, -inf
    %v226 = vmax.f32 %v222, %v225
    %v227 = vsel %vm195, %v193, -inf
    %v228 = vmax.f32 %v224, %v227
    %v229 = vsel %vm195, %v194, -inf
    %v230 = vmax.f32 %v226, %v229
    %v231 = vmax.f32 %v228, %v230
    %v232 = vrot.slane %v231, 4
    %v233 = vmax.f32 %v231, %v232
    %v234 = vrot.slane %v233, 2
    %v235 = vmax.f32 %v233, %v234
    %v236 = vrot.slane %v235, 1
    %v237 = vmax.f32 %v235, %v236
    %v238 = vld [vmem:[%s4] sm:$0x1]
    %v240 = vperm.slane %v238, 0
    %v242 = vadd.f32 %v216, %v240
    %v243 = vadd.f32 %v237, %v240
    %v244 = vld [vmem:[%s2] sm:$0x3]
    %v247 = vrot.slane %v243, 7
    %vm248 = vcmask 1041409
    %v249 = vsel %vm248, %v247, %v242
    %252 = vrot.lane.b32.xlu0 %v244, 32
    %v253 = vpop.permute.xlu0 %252
    %v255 = vsel %vm195, %v249, %v253
    %v256 = vld [vmem:[%s5] sm:$0xff]
    %v257 = vld [vmem:[%s5 + $0x8] sm:$0xff]
    %v258 = vld [vmem:[%s5 + $0x10] sm:$0xff]
    %v259 = vld [vmem:[%s5 + $0x18] sm:$0xff]
    %v260 = vld [vmem:[%s5 + $0x20] sm:$0xff]
    %v261 = vld [vmem:[%s5 + $0x28] sm:$0xff]
    %v262 = vld [vmem:[%s5 + $0x30] sm:$0xff]
    %v263 = vld [vmem:[%s5 + $0x38] sm:$0xff]
    %v264 = vld [vmem:[%s5 + $0x40] sm:$0xff]
    %v265 = vld [vmem:[%s6] sm:$0x1]
    %v267 = vperm.slane %v265, 0
    %vm269 = vcmask 588800
    %v271 = vsel %vm269, %v255, 0
    %273 = vmatpush.msra.mxu0 0.0
    %274 = vmatpush.msra.mxu0 0.0
    %275 = vmatpush.msra.mxu0 0.0
    %276 = vmatpush.msra.mxu0 0.0
    %277 = vmatpush.msra.mxu0 0.0
    %278 = vmatpush.msra.mxu0 0.0
    %279 = vmatpush.msra.mxu0 0.0
    %280 = vmatpush.msra.mxu0 %v264
    %281 = vmatpush.msra.mxu0 %v263
    %282 = vmatpush.msra.mxu0 %v262
    %283 = vmatpush.msra.mxu0 %v261
    %284 = vmatpush.msra.mxu0 %v260
    %285 = vmatpush.msra.mxu0 %v259
    %286 = vmatpush.msra.mxu0 %v258
    %287 = vmatpush.msra.mxu0 %v257
    %288 = vmatpush.msra.mxu0 %v256
    %289 = vmatmul.f32.gmra.mxu0 %v271
    %v290 = vpop.f32.mrf.mxu0
    %v291 = vadd.f32 %v267, %v290
    %292 = vdwg.mxu0
    %v293 = vmax.f32 %v291, 0.0
    %v294 = vld [vmem:[%s7] sm:$0xff]
    %v295 = vld [vmem:[%s7 + $0x8] sm:$0xff]
    %v296 = vld [vmem:[%s7 + $0x10] sm:$0xff]
    %v297 = vld [vmem:[%s7 + $0x18] sm:$0xff]
    %v298 = vld [vmem:[%s7 + $0x20] sm:$0xff]
    %v299 = vld [vmem:[%s7 + $0x28] sm:$0xff]
    %v300 = vld [vmem:[%s7 + $0x30] sm:$0xff]
    %v301 = vld [vmem:[%s7 + $0x38] sm:$0xff]
    %v302 = vld [vmem:[%s7 + $0x40] sm:$0xff]
    %v303 = vld [vmem:[%s7 + $0x48] sm:$0xff]
    %v304 = vld [vmem:[%s7 + $0x50] sm:$0xff]
    %v305 = vld [vmem:[%s7 + $0x58] sm:$0xff]
    %v306 = vld [vmem:[%s8] sm:$0x1]
    %v308 = vperm.slane %v306, 0
    %vm310 = vcmask 785408
    %v312 = vsel %vm310, %v293, 0
    %314 = vmatpush.msra.mxu0 0.0
    %315 = vmatpush.msra.mxu0 0.0
    %316 = vmatpush.msra.mxu0 0.0
    %317 = vmatpush.msra.mxu0 0.0
    %318 = vmatpush.msra.mxu0 %v305
    %319 = vmatpush.msra.mxu0 %v304
    %320 = vmatpush.msra.mxu0 %v303
    %321 = vmatpush.msra.mxu0 %v302
    %322 = vmatpush.msra.mxu0 %v301
    %323 = vmatpush.msra.mxu0 %v300
    %324 = vmatpush.msra.mxu0 %v299
    %325 = vmatpush.msra.mxu0 %v298
    %326 = vmatpush.msra.mxu0 %v297
    %327 = vmatpush.msra.mxu0 %v296
    %328 = vmatpush.msra.mxu0 %v295
    %329 = vmatpush.msra.mxu0 %v294
    %330 = vmatmul.f32.gmra.mxu0 %v312
    %v331 = vpop.f32.mrf.mxu0
    %v332 = vadd.f32 %v308, %v331
    %333 = vdwg.mxu0
    %v334 = vmul.f32 %v332, 0.5
    %v335 = vtanh.pop %v334
    %v336 = vadd.f32 %v335, 1.0
    %v337 = vmul.f32 %v336, 0.5
    %338 = vst [vmem:[#allocation2] sm:$0x3] %v337
    // Predicated region
    $region38: #{forward.1} parent=1 // pred_check
      _
    $region39: #{forward.1} parent=1 // pred_check_branch
      %340 = sbr.rel (0) target = $region41
    $region40: #{forward.1} parent=1 // pred_region
      %342 = vsyncadd [#allocation3], 0
      %s344 = sshll.u32 [#allocation2], 4
      %s345 = int_to_ptr.vmem [resolvable:$true] %s344
      %s346 = sshll.u32 %s9, 4
      %s347 = int_to_ptr.hbm [resolvable:$true] %s346
      %349 = dma.vmem_to_hbm [thread:$0]  %s345, 32, %s347, [#allocation3]
    $region41: #{forward.1} parent=1 // pred_fallthru
      _
    // Predicated region
    $region42: #{forward.1} parent=1 // pred_check
      _
    $region43: #{forward.1} parent=1 // pred_check_branch
      %351 = sbr.rel (0) target = $region45
    $region44: #{forward.1} parent=1 // pred_region
      %353 = dma.done [#allocation3], 32
    $region45: #{forward.1} parent=1 // pred_fallthru
      _
    %354 = vsyncpa [#allocation3], 1

</llo_original>
